<compile_context>
chip_gen: v7x
topology: tpu7x:2x2x1
jax: 0.10.0
libtpu: 0.0.40
codegen_flags: <defaults>
</compile_context>

<pallas_src>
import functools

import numpy as np
import jax
import jax.numpy as jnp
from jax.experimental import pallas as pl
from jax.experimental.pallas import tpu as pltpu


_VMEM_LIMIT_BYTES = 48 * 1024 * 1024   # > 16/32 MiB scoped defaults, < v7x 64 MiB physical


def _round_up(x, m):
    return ((x + m - 1) // m) * m


def _cdiv(a, b):
    return -(-a // b)


def _proto_loss_kernel(protos_ref, psq_ref, query_ref, nll_ref, yhat_ref, *,
                       n_query):
    """One query tile against the (grid-constant) class prototypes.

    protos_ref: (C, D) bf16     psq_ref: (C, 1) f32     query_ref: (tile_q, D) bf16
    nll_ref / yhat_ref: (1, tile_q) f32 / int32 — lane-dense per-query outputs.
    """
    tile_q = query_ref.shape[0]

    q = query_ref[...]                                   # (tile_q, D) bf16
    protos = protos_ref[...]                             # (C, D)      bf16
    p_sq = psq_ref[...]                                  # (C, 1)      f32

    # squared euclidean dist = ||q||^2 + ||p||^2 - 2 q.p; the per-query ||q||^2
    # is a column constant that cancels in log-softmax / argmax / NLL, so only
    #   neg = 2 q.p - ||p||^2   (== -dists + const)   is needed.
    # Compute directly in the transposed (class x query) layout so per-query
    # results come out lane-dense.
    cross = jax.lax.dot_general(
        protos, q, (((1,), (1,)), ((), ())),
        preferred_element_type=jnp.float32)              # (C, tile_q) f32
    neg = 2.0 * cross - p_sq                             # (C, tile_q) f32

    nc, nq_cols = neg.shape
    cls = jax.lax.broadcasted_iota(jnp.int32, (nc, nq_cols), 0)

    # Column max: used for the softmax shift AND for argmax
    # (argmax(neg) == argmax(log_p) exactly — no second cross-class max needed).
    m = jnp.max(neg, axis=0, keepdims=True)              # (1, tile_q)
    cand = jnp.where(neg == m, cls, nc)
    y_hat = jnp.min(cand, axis=0, keepdims=True)         # first max index (torch.max)

    # log_softmax(-dists) over the class axis (f32 math).
    shifted = neg - m
    log_p = shifted - jnp.log(jnp.sum(jnp.exp(shifted), axis=0, keepdims=True))

    # In-kernel targets: queries are grouped by class; class c owns global query
    # rows [c * n_query, (c + 1) * n_query).
    col_g = (pl.program_id(0) * tile_q
             + jax.lax.broadcasted_iota(jnp.int32, (1, nq_cols), 1))
    lo = cls * n_query
    onehot = (lo <= col_g) & (col_g < lo + n_query)      # (C, tile_q)

    nll = -jnp.sum(jnp.where(onehot, log_p, 0.0), axis=0, keepdims=True)   # (1, tile_q)

    # lane-dense stores (full-width vst, no masked partial stores)
    nll_ref[...] = nll
    yhat_ref[...] = y_hat


def _pick_tile(nq, d_pad, n_classes):
    """Query-axis tile size from an explicit VMEM budget.

    Budget ~60% of the requested scoped VMEM for the double-buffered bf16 query
    tile plus the (tiny, post-hoist) resident prototypes; cap at 1024 rows
    (grid overhead is amortized by then); use >= 2 grid steps when Nq allows so
    both v7x TensorCores get work; balance tiles to minimize pad waste.
    """
    resident = 2 * n_classes * d_pad * 2 + 4096          # dbl-buffered protos + p_sq
    budget = int(0.6 * _VMEM_LIMIT_BYTES) - resident
    # per query row: 2 (double-buffer) * D * 2B bf16 input + f32 intermediates
    # over the class axis (cross/neg/log_p) + lane-dense output rows.
    row_bytes = 2 * d_pad * 2 + 16 * max(n_classes, 128)
    cap = max(128, min(1024, (budget // row_bytes) // 128 * 128))

    min_tiles = 2 if nq > 128 else 1                     # v7x: 2 TCs -> >= 2 grid steps
    num_tiles = max(min_tiles, _cdiv(nq, cap))
    tile_q = _round_up(_cdiv(nq, num_tiles), 128)        # balanced, 128-aligned tiles
    num_tiles = max(1, _cdiv(nq, tile_q))
    return tile_q, num_tiles


def _run_kernel(protos, p_sq, query_pad, n_query, tile_q, num_tiles):
    c, d = protos.shape

    kernel = functools.partial(_proto_loss_kernel, n_query=n_query)

    grid_spec = pltpu.PrefetchScalarGridSpec(
        num_scalar_prefetch=0,
        grid=(num_tiles,),
        in_specs=[
            # Grid-constant prototypes / ||p||^2. After hoisting the support
            # mean these are tiny, so default double-buffering costs ~nothing
            # (pl.Buffered(1) single-buffering is not worth the extra plumbing).
            pl.BlockSpec((c, d), lambda i: (0, 0)),
            pl.BlockSpec((c, 1), lambda i: (0, 0)),
            pl.BlockSpec((tile_q, d), lambda i: (i, 0)),   # query tile (pipelined)
        ],
        out_specs=(
            pl.BlockSpec((1, tile_q), lambda i: (i, 0)),   # per-query NLL (lane-dense)
            pl.BlockSpec((1, tile_q), lambda i: (i, 0)),   # per-query prediction
        ),
    )
    return pl.pallas_call(
        kernel,
        out_shape=(
            jax.ShapeDtypeStruct((num_tiles, tile_q), jnp.float32),
            jax.ShapeDtypeStruct((num_tiles, tile_q), jnp.int32),
        ),
        grid_spec=grid_spec,
        compiler_params=pltpu.CompilerParams(
            dimension_semantics=("parallel",),
            vmem_limit_bytes=_VMEM_LIMIT_BYTES),
    )(protos, p_sq, query_pad)


def _f1_weighted(y_true, y_pred):
    # weighted F1 (same result as sklearn.metrics.f1_score(average='weighted'))
    classes = np.unique(y_true)
    f1s, weights = [], []
    for c in classes:
        tp = np.sum((y_pred == c) & (y_true == c))
        fp = np.sum((y_pred == c) & (y_true != c))
        fn = np.sum((y_pred != c) & (y_true == c))
        prec = tp / (tp + fp) if (tp + fp) > 0 else 0.0
        rec = tp / (tp + fn) if (tp + fn) > 0 else 0.0
        f1 = 2.0 * prec * rec / (prec + rec) if (prec + rec) > 0 else 0.0
        f1s.append(f1)
        weights.append(np.sum(y_true == c))
    return float(np.average(f1s, weights=weights))


def prototypical_loss(inp, target, n_support):
    # TODO(synk): torch.unique / nonzero index selection is dynamic-shape; done
    # host-side in numpy (no clean Pallas equivalent).
    target_np = np.asarray(target)
    classes = np.unique(target_np)
    n_classes = len(classes)
    n_query = int(np.sum(target_np == classes[0])) - n_support

    support_idxs = np.stack(
        [np.nonzero(target_np == c)[0][:n_support] for c in classes])   # (C, S)
    query_idxs = np.concatenate(
        [np.nonzero(target_np == c)[0][n_support:] for c in classes])   # (C*Q,)

    inp = jnp.asarray(inp, dtype=jnp.float32)
    d = inp.shape[1]
    d_pad = _round_up(d, 128)   # pad D once host-side; zeros change neither q.p nor ||p||^2

    # Prototype barycentres hoisted out of the kernel: f32 mean over the support
    # shots, one cast of the final (C, D) prototypes to bf16 for the MXU.
    protos_f32 = jnp.mean(inp[support_idxs], axis=1)                     # (C, D)
    protos_bf16 = protos_f32.astype(jnp.bfloat16)
    # ||p||^2 from the *bf16* prototypes (back in f32) so it is consistent with
    # the bf16 operands of the in-kernel cross term.
    p_sq = jnp.sum(jnp.square(protos_bf16.astype(jnp.float32)),
                   axis=1, keepdims=True)                                # (C, 1)

    query = inp[query_idxs].astype(jnp.bfloat16)        # (C*n_query, D), grouped by class

    nq = n_classes * n_query
    if d_pad != d:
        protos_bf16 = jnp.pad(protos_bf16, ((0, 0), (0, d_pad - d)))
        query = jnp.pad(query, ((0, 0), (0, d_pad - d)))

    tile_q, num_tiles = _pick_tile(nq, d_pad, n_classes)
    nq_pad = tile_q * num_tiles
    if nq_pad != nq:
        query = jnp.pad(query, ((0, nq_pad - nq), (0, 0)))

    nll, yhat = _run_kernel(protos_bf16, p_sq, query, n_query, tile_q, num_tiles)

    # lane-dense (num_tiles, tile_q) slabs -> flat global query order, drop padding
    nll = nll.reshape(-1)[:nq]
    yhat = yhat.reshape(-1)[:nq]

    y_true = np.repeat(np.arange(n_classes), n_query)
    # tiny trailing reductions (and the "correct" flags, dropped from the kernel)
    loss = jnp.mean(nll)
    acc = jnp.mean((yhat == jnp.asarray(y_true, dtype=jnp.int32)).astype(jnp.float32))

    y_pred = np.asarray(jax.device_get(yhat))
    # TODO(synk): f1_score is an sklearn host-side metric; computed in numpy, not Pallas.
    f1 = _f1_weighted(y_true, y_pred)
    return loss, acc, f1, y_true, y_pred


class PrototypicalLoss:
    """Pallas-backed equivalent of the PyTorch PrototypicalLoss module."""

    def __init__(self, n_support):
        self.n_support = n_support

    def __call__(self, input, target):
        return prototypical_loss(input, target, self.n_support)


if __name__ == "__main__":
    key = jax.random.PRNGKey(0)

    n_classes, n_support, n_query, feat_dim = 4, 2, 3, 32
    n_per_class = n_support + n_query
    n = n_classes * n_per_class

    # deterministic labels (each class appears n_support + n_query times),
    # deterministically shuffled
    target = np.repeat(np.arange(n_classes), n_per_class)
    target = target[np.random.default_rng(0).permutation(n)]

    # deterministic "model output" features
    x = jax.random.normal(key, (n, feat_dim), dtype=jnp.float32)

    loss_fn = PrototypicalLoss(n_support)
    loss, acc, f1, y_true, y_pred = loss_fn(x, target)
    jax.block_until_ready((loss, acc))

    print("KERNEL_OK")
</pallas_src>

<mosaic_0001>
module attributes {stable_mosaic.version = 11 : i64} {
  func.func @_proto_loss_kernel(%arg0: i32, %arg1: memref<4x128xbf16, #tpu.memory_space<vmem>>, %arg2: memref<4x1xf32, #tpu.memory_space<vmem>>, %arg3: memref<128x128xbf16, #tpu.memory_space<vmem>>, %arg4: memref<1x128xf32, #tpu.memory_space<vmem>>, %arg5: memref<1x128xi32, #tpu.memory_space<vmem>>) attributes {dimension_semantics = [#tpu.dimension_semantics<parallel>], iteration_bounds = array<i64: 1>, scalar_prefetch = 0 : i64, scratch_operands = 0 : i64, tpu.core_type = #tpu.core_type<tc>, window_params = [{pipeline_mode = #tpu.pipeline_mode<synchronous>, transform_indices = @transform_0, window_bounds = array<i64: 4, 128>}, {pipeline_mode = #tpu.pipeline_mode<synchronous>, transform_indices = @transform_1, window_bounds = array<i64: 4, 1>}, {transform_indices = @transform_2, window_bounds = array<i64: 128, 128>}, {transform_indices = @transform_3, window_bounds = array<i64: 1, 128>}, {transform_indices = @transform_4, window_bounds = array<i64: 1, 128>}]} {
    %c0 = arith.constant 0 : index
    %c0_0 = arith.constant 0 : index
    %0 = vector.load %arg3[%c0, %c0_0] : memref<128x128xbf16, #tpu.memory_space<vmem>>, vector<128x128xbf16>
    %c0_1 = arith.constant 0 : index
    %c0_2 = arith.constant 0 : index
    %1 = vector.load %arg1[%c0_1, %c0_2] : memref<4x128xbf16, #tpu.memory_space<vmem>>, vector<4x128xbf16>
    %c0_3 = arith.constant 0 : index
    %c0_4 = arith.constant 0 : index
    %2 = vector.load %arg2[%c0_3, %c0_4] : memref<4x1xf32, #tpu.memory_space<vmem>>, vector<4x1xf32>
    %cst = arith.constant dense<0.000000e+00> : vector<4x128xf32>
    %3 = tpu.matmul %1, %0, %cst {dimension_numbers = #tpu.dot_dimension_numbers<[1], [1], [0], [0], [0, 0, 1, 0], [], []>} : vector<4x128xbf16>, vector<128x128xbf16>, vector<4x128xf32> -> vector<4x128xf32>
    %cst_5 = arith.constant 2.000000e+00 : f32
    %4 = vector.broadcast %cst_5 : f32 to vector<4x128xf32>
    %5 = arith.mulf %4, %3 : vector<4x128xf32>
    %6 = vector.broadcast %2 : vector<4x1xf32> to vector<4x128xf32>
    %7 = arith.subf %5, %6 : vector<4x128xf32>
    %8 = tpu.iota {dimensions = array<i32: 0>} : vector<4x128xi32>
    %cst_6 = arith.constant dense<0xFF800000> : vector<128xf32>
    %9 = vector.multi_reduction <maximumf>, %7, %cst_6 [0] : vector<4x128xf32> to vector<128xf32>
    %10 = vector.shape_cast %9 : vector<128xf32> to vector<1x128xf32>
    %11 = vector.broadcast %10 : vector<1x128xf32> to vector<4x128xf32>
    %12 = arith.cmpf oeq, %7, %11 : vector<4x128xf32>
    %c4_i32 = arith.constant 4 : i32
    %13 = vector.broadcast %c4_i32 : i32 to vector<4x128xi32>
    %14 = arith.select %12, %8, %13 : vector<4x128xi1>, vector<4x128xi32>
    %cst_7 = arith.constant dense<2147483647> : vector<128xi32>
    %15 = vector.multi_reduction <minsi>, %14, %cst_7 [0] : vector<4x128xi32> to vector<128xi32>
    %16 = vector.shape_cast %15 : vector<128xi32> to vector<1x128xi32>
    %17 = vector.broadcast %10 : vector<1x128xf32> to vector<4x128xf32>
    %18 = arith.subf %7, %17 : vector<4x128xf32>
    %19 = math.exp %18 : vector<4x128xf32>
    %cst_8 = arith.constant dense<0.000000e+00> : vector<128xf32>
    %20 = vector.multi_reduction <add>, %19, %cst_8 [0] : vector<4x128xf32> to vector<128xf32>
    %21 = vector.shape_cast %20 : vector<128xf32> to vector<1x128xf32>
    %22 = math.log %21 : vector<1x128xf32>
    %23 = vector.broadcast %22 : vector<1x128xf32> to vector<4x128xf32>
    %24 = arith.subf %18, %23 : vector<4x128xf32>
    %c128_i32 = arith.constant 128 : i32
    %25 = arith.muli %arg0, %c128_i32 : i32
    %26 = tpu.iota {dimensions = array<i32: 1>} : vector<1x128xi32>
    %27 = vector.broadcast %25 : i32 to vector<1x128xi32>
    %28 = arith.addi %27, %26 : vector<1x128xi32>
    %c3_i32 = arith.constant 3 : i32
    %29 = vector.broadcast %c3_i32 : i32 to vector<4x128xi32>
    %30 = arith.muli %8, %29 : vector<4x128xi32>
    %31 = vector.broadcast %28 : vector<1x128xi32> to vector<4x128xi32>
    %32 = arith.cmpi sle, %30, %31 : vector<4x128xi32>
    %c3_i32_9 = arith.constant 3 : i32
    %33 = vector.broadcast %c3_i32_9 : i32 to vector<4x128xi32>
    %34 = arith.addi %30, %33 : vector<4x128xi32>
    %35 = vector.broadcast %28 : vector<1x128xi32> to vector<4x128xi32>
    %36 = arith.cmpi slt, %35, %34 : vector<4x128xi32>
    %37 = arith.andi %32, %36 : vector<4x128xi1>
    %cst_10 = arith.constant 0.000000e+00 : f32
    %38 = vector.broadcast %cst_10 : f32 to vector<4x128xf32>
    %39 = arith.select %37, %24, %38 : vector<4x128xi1>, vector<4x128xf32>
    %cst_11 = arith.constant dense<0.000000e+00> : vector<128xf32>
    %40 = vector.multi_reduction <add>, %39, %cst_11 [0] : vector<4x128xf32> to vector<128xf32>
    %41 = vector.shape_cast %40 : vector<128xf32> to vector<1x128xf32>
    %cst_12 = arith.constant 0.000000e+00 : f32
    %42 = vector.broadcast %cst_12 : f32 to vector<1x128xf32>
    %43 = arith.subf %42, %41 : vector<1x128xf32>
    %c0_13 = arith.constant 0 : index
    %c0_14 = arith.constant 0 : index
    %44 = vector.load %arg4[%c0_13, %c0_14] : memref<1x128xf32, #tpu.memory_space<vmem>>, vector<1x128xf32>
    tpu.vector_store %arg4[%c0_13, %c0_14], %43 {strides = array<i32>} : memref<1x128xf32, #tpu.memory_space<vmem>>, vector<1x128xf32>,
    %c0_15 = arith.constant 0 : index
    %c0_16 = arith.constant 0 : index
    %45 = vector.load %arg5[%c0_15, %c0_16] : memref<1x128xi32, #tpu.memory_space<vmem>>, vector<1x128xi32>
    tpu.vector_store %arg5[%c0_15, %c0_16], %16 {strides = array<i32>} : memref<1x128xi32, #tpu.memory_space<vmem>>, vector<1x128xi32>,
    return
  }
  func.func @transform_0(%arg0: i32) -> (i32, i32) {
    %c0_i32 = arith.constant 0 : i32
    %c0_i32_0 = arith.constant 0 : i32
    %c0_i32_1 = arith.constant 0 : i32
    return %c0_i32, %c0_i32_0 : i32, i32
  }
  func.func @transform_1(%arg0: i32) -> (i32, i32) {
    %c0_i32 = arith.constant 0 : i32
    %c0_i32_0 = arith.constant 0 : i32
    %c0_i32_1 = arith.constant 0 : i32
    return %c0_i32, %c0_i32_0 : i32, i32
  }
  func.func @transform_2(%arg0: i32) -> (i32, i32) {
    %c0_i32 = arith.constant 0 : i32
    %c0_i32_0 = arith.constant 0 : i32
    return %arg0, %c0_i32 : i32, i32
  }
  func.func @transform_3(%arg0: i32) -> (i32, i32) {
    %c0_i32 = arith.constant 0 : i32
    %c0_i32_0 = arith.constant 0 : i32
    return %arg0, %c0_i32 : i32, i32
  }
  func.func @transform_4(%arg0: i32) -> (i32, i32) {
    %c0_i32 = arith.constant 0 : i32
    %c0_i32_0 = arith.constant 0 : i32
    return %arg0, %c0_i32 : i32, i32
  }
}

</mosaic_0001>

<llo_original>
// kernel: tpu_custom_call.1
$region0: #{tpu_custom_call.1}
  #allocation0 [shape = 'u32[]', space=smem, size = 0x4, offset = 0x4, fixed_abs, tag = 'smem constant byte address 0x4 - core index']
  #allocation1 [shape = 'u32[144,128]{1,0:T(1,128)}', space=vmem, size = 0x12000, scoped, tag = 'internal scratch']
  %s0 = inlined_call_operand.vmem [shape: bf16[4,128], index: 0, kind: input, shape index: {}]
  %s1 = inlined_call_operand.vmem [shape: f32[4,1], index: 1, kind: input, shape index: {}]
  %s2 = inlined_call_operand.hbm [shape: bf16[128,128], index: 2, kind: input, shape index: {}]
  %s3 = inlined_call_operand.hbm [shape: f32[1,128], index: 3, kind: output, shape index: {0}]
  %s4 = inlined_call_operand.hbm [shape: s32[1,128], index: 4, kind: output, shape index: {1}]
  %5 = xla_tuple %s3, %s4
  %s6 = sld [smem:[#allocation0]]
  $region34: #{tpu_custom_call.1} parent=0
    _
  %s8 = ssub.s32 1, %s6
  %s9 = scalar_select 0, %s8, %s6
  $region1: #{tpu_custom_call.1} parent=0
    #allocation2 [shape = 'u8[32768]{0}', space=vmem, size = 0x8000, scoped, tag = 'input window, operand 2, single buffered']
    #allocation3 [shape = 's32[1]{0}', space=sflag, size = 0x4, scoped, tag = 'scoped memory for tpu_custom_call.1']
    #allocation4 [shape = 's32[1]{0}', space=sflag, size = 0x4, scoped, tag = 'scoped memory for tpu_custom_call.1']
    #allocation5 [shape = 'u8[512]{0}', space=vmem, size = 0x400, scoped, tag = 'output window, operand 0, single buffered']
    #allocation6 [shape = 'u8[512]{0}', space=vmem, size = 0x400, scoped, tag = 'output window, operand 1, single buffered']
    #allocation7 [shape = 's32[1]{0}', space=sflag, size = 0x4, scoped, tag = 'scoped memory for tpu_custom_call.1']
    %10 = vsyncpa [#allocation3], 0
    %11 = vsyncpa [#allocation4], 0
    %12 = vsyncpa [#allocation7], 0
    // Predicated region
    $region2: #{tpu_custom_call.1} parent=1 // pred_check
      _
    $region3: #{tpu_custom_call.1} parent=1 // pred_check_branch
      %14 = sbr.rel (0) target = $region5
    $region4: #{tpu_custom_call.1} parent=1 // pred_region
      _
    $region5: #{tpu_custom_call.1} parent=1 // pred_fallthru
      _
    // Predicated region
    $region6: #{tpu_custom_call.1} parent=1 // pred_check
      _
    $region7: #{tpu_custom_call.1} parent=1 // pred_check_branch
      %16 = sbr.rel (0) target = $region9
    $region8: #{tpu_custom_call.1} parent=1 // pred_region
      _
    $region9: #{tpu_custom_call.1} parent=1 // pred_fallthru
      _
    // Predicated region
    $region10: #{tpu_custom_call.1} parent=1 // pred_check
      _
    $region11: #{tpu_custom_call.1} parent=1 // pred_check_branch
      %18 = sbr.rel (0) target = $region13
    $region12: #{tpu_custom_call.1} parent=1 // pred_region
      %s20 = ssub.s32 1024, 1024
      %21 = vsyncadd [#allocation3], %s20
      %s22 = sshll.u32 [#allocation2], 4
      %s23 = int_to_ptr.vmem [resolvable:$true] %s22
      %28 = dma.hbm_to_vmem [thread:$0]  %s2, 1024, %s23, [#allocation3], 64, 64, 4
    $region13: #{tpu_custom_call.1} parent=1 // pred_fallthru
      _
    // Predicated region
    $region14: #{tpu_custom_call.1} parent=1 // pred_check
      _
    $region15: #{tpu_custom_call.1} parent=1 // pred_check_branch
      %30 = sbr.rel (0) target = $region17
    $region16: #{tpu_custom_call.1} parent=1 // pred_region
      %31 = dma.done [#allocation3], 1024
    $region17: #{tpu_custom_call.1} parent=1 // pred_fallthru
      _
    %v33 = vld [vmem:[#allocation2] sm:$0xf]
    %v34 = vld [vmem:[#allocation2 + $0x4] sm:$0xf]
    %v35 = vld [vmem:[#allocation2 + $0x8] sm:$0xf]
    %v36 = vld [vmem:[#allocation2 + $0xc] sm:$0xf]
    %v37 = vld [vmem:[#allocation2 + $0x10] sm:$0xf]
    %v38 = vld [vmem:[#allocation2 + $0x14] sm:$0xf]
    %v39 = vld [vmem:[#allocation2 + $0x18] sm:$0xf]
    %v40 = vld [vmem:[#allocation2 + $0x1c] sm:$0xf]
    %v41 = vld [vmem:[#allocation2 + $0x20] sm:$0xf]
    %v42 = vld [vmem:[#allocation2 + $0x24] sm:$0xf]
    %v43 = vld [vmem:[#allocation2 + $0x28] sm:$0xf]
    %v44 = vld [vmem:[#allocation2 + $0x2c] sm:$0xf]
    %v45 = vld [vmem:[#allocation2 + $0x30] sm:$0xf]
    %v46 = vld [vmem:[#allocation2 + $0x34] sm:$0xf]
    %v47 = vld [vmem:[#allocation2 + $0x38] sm:$0xf]
    %v48 = vld [vmem:[#allocation2 + $0x3c] sm:$0xf]
    %v49 = vld [vmem:[%s0] sm:$0x3]
    %v50 = vld [vmem:[%s1] sm:$0xf]
    %v67 = vunpack.c.l.b16 %v33
    %v68 = vunpack.c.l.b16 %v34
    %v69 = vunpack.c.l.b16 %v35
    %v70 = vunpack.c.l.b16 %v36
    %v71 = vunpack.c.l.b16 %v37
    %v72 = vunpack.c.l.b16 %v38
    %v73 = vunpack.c.l.b16 %v39
    %v74 = vunpack.c.l.b16 %v40
    %v75 = vunpack.c.l.b16 %v41
    %v76 = vunpack.c.l.b16 %v42
    %v77 = vunpack.c.l.b16 %v43
    %v78 = vunpack.c.l.b16 %v44
    %v79 = vunpack.c.l.b16 %v45
    %v80 = vunpack.c.l.b16 %v46
    %v81 = vunpack.c.l.b16 %v47
    %v82 = vunpack.c.l.b16 %v48
    %v83 = vpack.c.b16 %v68, %v67
    %v84 = vpack.c.b16 %v70, %v69
    %v85 = vpack.c.b16 %v72, %v71
    %v86 = vpack.c.b16 %v74, %v73
    %v87 = vpack.c.b16 %v76, %v75
    %v88 = vpack.c.b16 %v78, %v77
    %v89 = vpack.c.b16 %v80, %v79
    %v90 = vpack.c.b16 %v82, %v81
    %99 = vmatprep.subr.bf16.mxu0 0
    %100 = vmatpush1.bf16.xpose.msra.mxu0 %v83
    %101 = vmatprep.subr.bf16.mxu0 0
    %102 = vmatpush1.bf16.xpose.msra.mxu0 %v84
    %103 = vmatprep.subr.bf16.mxu0 0
    %104 = vmatpush1.bf16.xpose.msra.mxu0 %v85
    %105 = vmatprep.subr.bf16.mxu0 0
    %106 = vmatpush1.bf16.xpose.msra.mxu0 %v86
    %107 = vmatprep.subr.bf16.mxu0 0
    %108 = vmatpush1.bf16.xpose.msra.mxu0 %v87
    %109 = vmatprep.subr.bf16.mxu0 0
    %110 = vmatpush1.bf16.xpose.msra.mxu0 %v88
    %111 = vmatprep.subr.bf16.mxu0 0
    %112 = vmatpush1.bf16.xpose.msra.mxu0 %v89
    %113 = vmatprep.subr.bf16.mxu0 0
    %114 = vmatpush1.bf16.xpose.msra.mxu0 %v90
    %115 = vmatprep.subr.bf16.mxu0 0
    %116 = vmatpush1.bf16.xpose.msra.mxu0 0
    %117 = vmatprep.subr.bf16.mxu0 0
    %118 = vmatpush1.bf16.xpose.msra.mxu0 0
    %119 = vmatprep.subr.bf16.mxu0 0
    %120 = vmatpush1.bf16.xpose.msra.mxu0 0
    %121 = vmatprep.subr.bf16.mxu0 0
    %122 = vmatpush1.bf16.xpose.msra.mxu0 0
    %123 = vmatprep.subr.bf16.mxu0 0
    %124 = vmatpush1.bf16.xpose.msra.mxu0 0
    %125 = vmatprep.subr.bf16.mxu0 0
    %126 = vmatpush1.bf16.xpose.msra.mxu0 0
    %127 = vmatprep.subr.bf16.mxu0 0
    %128 = vmatpush1.bf16.xpose.msra.mxu0 0
    %129 = vmatprep.subr.bf16.mxu0 0
    %130 = vmatpush1.bf16.xpose.msra.mxu0 0
    %131 = vmatprep.mubr.bf16.mxu0 0
    %132 = vmatmul.mubr.bf16.gmra.mrb[0].mxu0 %v49
    %v133 = vpop.f32.mrb[0].mxu0
    %v134 = vadd.f32 0.0, %v133
    %v135 = vpop.f32.mrb[0].mxu0
    %v136 = vpop.f32.mrb[0].mxu0
    %v137 = vpop.f32.mrb[0].mxu0
    %138 = vdwg.mxu0
    %v139 = vmul.f32 %v134, 2.0
    %141 = vset.pattern.permute.xlu0 0
    %142 = vperm.xlu0 %141, %v50
    %v143 = vpop.permute.xlu0 %142
    %v145 = vsub.f32 %v139, %v143
    %v146 = vlaneseq
    %v147 = vshrl.u32 %v146, 7
    %vm148 = vcmask 1043456
    %v149 = vsel %vm148, %v145, -inf
    %v150 = vrot.slane %v149, 4
    %v151 = vmax.f32 %v149, %v150
    %v152 = vrot.slane %v151, 2
    %v153 = vmax.f32 %v151, %v152
    %v154 = vrot.slane %v153, 1
    %v155 = vmax.f32 %v153, %v154
    %vm156 = vcmp.eq.f32.partialorder %v145, %v155
    %v157 = vsel %vm156, %v147, 4
    %v158 = vsel %vm148, %v157, 2147483647
    %v159 = vrot.slane %v158, 4
    %vm160 = vcmp.lt.s32.totalorder %v158, %v159
    %v161 = vsel %vm160, %v158, %v159
    %v162 = vrot.slane %v161, 2
    %vm163 = vcmp.lt.s32.totalorder %v161, %v162
    %v164 = vsel %vm163, %v161, %v162
    %v165 = vrot.slane %v164, 1
    %vm166 = vcmp.lt.s32.totalorder %v164, %v165
    %v167 = vsel %vm166, %v164, %v165
    %v168 = vsub.f32 %v145, %v155
    %v169 = vmul.f32 %v168, 1.442695
    %v170 = vpow.pop %v169
    %v171 = vsel %vm148, %v170, 0.0
    %v172 = vrot.slane %v171, 4
    %v173 = vadd.f32 %v171, %v172
    %v174 = vrot.slane %v173, 2
    %v175 = vadd.f32 %v173, %v174
    %v176 = vrot.slane %v175, 1
    %v177 = vadd.f32 %v175, %v176
    %v178 = vlog2.pop %v177
    %v179 = vmul.f32 %v178, 0.6931472
    %v180 = vsub.f32 %v168, %v179
    %s181 = smul.u32 0, 128
    %v182 = vlaneseq
    %v183 = vand.u32 %v182, 127
    %v184 = vstv %s181
    %v185 = vadd.s32 %v184, %v183
    %v186 = vmul.u32 %v147, 3
    %vm187 = vcmp.le.s32.totalorder %v186, %v185
    %v188 = vadd.s32 %v186, 3
    %vm189 = vcmp.lt.s32.totalorder %v185, %v188
    %vm190 = vmand %vm187, %vm189
    %v191 = vsel %vm190, %v180, 0.0
    %v192 = vsel %vm148, %v191, 0.0
    %v193 = vrot.slane %v192, 4
    %v194 = vadd.f32 %v192, %v193
    %v195 = vrot.slane %v194, 2
    %v196 = vadd.f32 %v194, %v195
    %v197 = vrot.slane %v196, 1
    %v198 = vadd.f32 %v196, %v197
    %v199 = vsub.f32 0.0, %v198
    %200 = vst [vmem:[#allocation5] sm:$0x1] %v199
    %201 = vst [vmem:[#allocation6] sm:$0x1] %v167
    // Predicated region
    $region18: #{tpu_custom_call.1} parent=1 // pred_check
      _
    $region19: #{tpu_custom_call.1} parent=1 // pred_check_branch
      %203 = sbr.rel (0) target = $region21
    $region20: #{tpu_custom_call.1} parent=1 // pred_region
      %s205 = ssub.s32 16, 16
      %206 = vsyncadd [#allocation4], %s205
      %s208 = sshll.u32 [#allocation5], 4
      %s209 = int_to_ptr.vmem [resolvable:$true] %s208
      %211 = dma.vmem_to_hbm [thread:$0]  %s209, 16, %s3, [#allocation4]
    $region21: #{tpu_custom_call.1} parent=1 // pred_fallthru
      _
    // Predicated region
    $region22: #{tpu_custom_call.1} parent=1 // pred_check
      _
    $region23: #{tpu_custom_call.1} parent=1 // pred_check_branch
      %213 = sbr.rel (0) target = $region25
    $region24: #{tpu_custom_call.1} parent=1 // pred_region
      %s215 = ssub.s32 16, 16
      %216 = vsyncadd [#allocation7], %s215
      %s218 = sshll.u32 [#allocation6], 4
      %s219 = int_to_ptr.vmem [resolvable:$true] %s218
      %221 = dma.vmem_to_hbm [thread:$0]  %s219, 16, %s4, [#allocation7]
    $region25: #{tpu_custom_call.1} parent=1 // pred_fallthru
      _
    // Predicated region
    $region26: #{tpu_custom_call.1} parent=1 // pred_check
      _
    $region27: #{tpu_custom_call.1} parent=1 // pred_check_branch
      %223 = sbr.rel (0) target = $region29
    $region28: #{tpu_custom_call.1} parent=1 // pred_region
      %224 = dma.done [#allocation4], 16
    $region29: #{tpu_custom_call.1} parent=1 // pred_fallthru
      _
    // Predicated region
    $region30: #{tpu_custom_call.1} parent=1 // pred_check
      _
    $region31: #{tpu_custom_call.1} parent=1 // pred_check_branch
      %226 = sbr.rel (0) target = $region33
    $region32: #{tpu_custom_call.1} parent=1 // pred_region
      %227 = dma.done [#allocation7], 16
    $region33: #{tpu_custom_call.1} parent=1 // pred_fallthru
      _
    %228 = vsyncpa [#allocation3], 1
    %229 = vsyncpa [#allocation4], 1
    %230 = vsyncpa [#allocation7], 1

</llo_original>
